<compile_context>
chip_gen: v7x
topology: tpu7x:2x2x1
jax: 0.10.0
libtpu: 0.0.40
codegen_flags: <defaults>
</compile_context>

<pallas_src>
import jax
import jax.numpy as jnp
from jax.experimental import pallas as pl
from jax.experimental.pallas import tpu as pltpu

FP = 128            # padded hidden feature width (lane-dense)
MAX_TB = 1024       # batch-tile rows (keeps 2x-buffered tiles well under 32 MiB VMEM)
NEG_BIG = -1e30     # pad value for unused output-logit lanes


def ffn_kernel(x_ref,
               w0_ref, b0_ref,
               w1_ref, b1_ref,
               w2_ref, b2_ref,
               wo_ref, bo_ref,
               out_ref):
    """One batch tile: 4 matmuls (bf16 MXU, f32 acc) + ReLU + softmax(dim=1)."""
    x = x_ref[...]                                    # (TB, input_size) bf16

    # Layer "input": Linear(input_size -> 128-padded) + ReLU (Dropout = identity)
    h = jnp.dot(x, w0_ref[...], preferred_element_type=jnp.float32) + b0_ref[...]
    h = jnp.maximum(h, 0.0)

    # Layer "Linear0": Linear + ReLU
    h = jnp.dot(h.astype(w1_ref.dtype), w1_ref[...],
                preferred_element_type=jnp.float32) + b1_ref[...]
    h = jnp.maximum(h, 0.0)

    # Layer "Linear1": Linear + ReLU
    h = jnp.dot(h.astype(w2_ref.dtype), w2_ref[...],
                preferred_element_type=jnp.float32) + b2_ref[...]
    h = jnp.maximum(h, 0.0)

    # Layer "output": Linear (padded lanes carry -1e30 bias -> exp()==0 below)
    logits = jnp.dot(h.astype(wo_ref.dtype), wo_ref[...],
                     preferred_element_type=jnp.float32) + bo_ref[...]

    # F.softmax(..., dim=1) over the lane-dense 128-wide slab; padded lanes contribute 0.
    m = jnp.max(logits, axis=-1, keepdims=True)
    e = jnp.exp(logits - m)
    denom = jnp.sum(e, axis=-1, keepdims=True)
    probs = e * pl.reciprocal(denom, approx=True)

    # Store only the real class columns (narrow HBM writeback).
    out_ref[...] = probs[:, : out_ref.shape[1]]


def _round_up(n, m):
    return ((n + m - 1) // m) * m


def _prepare_params(params, param_dtype=jnp.bfloat16):
    """Zero-pad every layer's output width to FP lanes; keep biases f32.

    Returns a flat list [w0, b0, w1, b1, ...] with:
      * weights (in_pad, FP) in `param_dtype` (in_pad = true input width for layer 0,
        FP for later layers),
      * biases (1, FP) f32; the FINAL layer's padded bias lanes are set to -1e30 so
        padded logits vanish under softmax.
    """
    prepared = []
    n = len(params)
    for idx, (w, b) in enumerate(params):
        fi, fo = w.shape
        in_pad = fi if idx == 0 else FP
        wp = jnp.zeros((in_pad, FP), param_dtype).at[:fi, :fo].set(w.astype(param_dtype))
        pad_val = NEG_BIG if idx == n - 1 else 0.0
        bp = jnp.full((1, FP), pad_val, jnp.float32).at[:, :fo].set(
            b.astype(jnp.float32).reshape(1, fo))
        prepared.extend([wp, bp])
    return prepared


def ffn_forward(x, params):
    """Batch-gridded, pipelined forward pass.  Returns (batch, output_classes) f32."""
    batch, input_size = x.shape
    out_classes = params[-1][0].shape[1]

    # Batch tiling: TB multiple of 8, capped for VMEM portability (v7x: 32 MiB scoped).
    tb = min(MAX_TB, _round_up(batch, 8))
    padded_batch = _round_up(batch, tb)
    num_tiles = padded_batch // tb

    # Stream x in bf16 (halves HBM read traffic), zero-pad extra batch rows.
    x_pad = jnp.zeros((padded_batch, input_size), jnp.bfloat16)
    x_pad = x_pad.at[:batch, :].set(x.astype(jnp.bfloat16))

    flat_params = _prepare_params(params)

    weight_spec = pl.BlockSpec((FP, FP), lambda i: (0, 0))        # VMEM-resident, DMA'd once
    bias_spec = pl.BlockSpec((1, FP), lambda i: (0, 0))
    in_specs = [
        pl.BlockSpec((tb, input_size), lambda i: (i, 0)),         # streamed x tile
        pl.BlockSpec((input_size, FP), lambda i: (0, 0)), bias_spec,   # layer "input"
        weight_spec, bias_spec,                                   # layer "Linear0"
        weight_spec, bias_spec,                                   # layer "Linear1"
        weight_spec, bias_spec,                                   # layer "output"
    ]
    # Output is only out_classes wide (full array dim) -> 32x less HBM writeback
    # than a 128-lane f32 slab; in-VMEM store is masked but compute is tiny.
    out_spec = pl.BlockSpec((tb, out_classes), lambda i: (i, 0))

    out_padded = pl.pallas_call(
        ffn_kernel,
        out_shape=jax.ShapeDtypeStruct((padded_batch, out_classes), jnp.float32),
        grid=(num_tiles,),
        in_specs=in_specs,
        out_specs=out_spec,
        compiler_params=pltpu.CompilerParams(
            dimension_semantics=("parallel",)),                   # shard batch across TCs
    )(x_pad, *flat_params)

    return out_padded[:batch, :out_classes]


def init_linear(key, fan_in, fan_out):
    """Deterministic init mimicking torch.nn.Linear (uniform +/- 1/sqrt(fan_in)).

    Weight returned as (fan_in, fan_out) = torch_weight.T so the kernel does x @ W.
    """
    kw, kb = jax.random.split(key)
    bound = 1.0 / (fan_in ** 0.5)
    w = jax.random.uniform(kw, (fan_in, fan_out), jnp.float32, -bound, bound)
    b = jax.random.uniform(kb, (1, fan_out), jnp.float32, -bound, bound)
    return w, b


if __name__ == "__main__":
    # Module config (small, consistent with ffn.__init__)
    input_size = 32
    perceptron_per_layer = [64, 32, 16]
    output_size = 4
    batch = 8

    key = jax.random.PRNGKey(0)
    k_x, k0, k1, k2, ko = jax.random.split(key, 5)

    x = jax.random.normal(k_x, (batch, input_size), jnp.float32)

    params = (
        init_linear(k0, input_size, perceptron_per_layer[0]),
        init_linear(k1, perceptron_per_layer[0], perceptron_per_layer[1]),
        init_linear(k2, perceptron_per_layer[1], perceptron_per_layer[2]),
        init_linear(ko, perceptron_per_layer[2], output_size),
    )

    out = jax.block_until_ready(ffn_forward(x, params))

    # Pure-JAX reference with the same bf16 matmul / f32 accumulate path.
    def ref(x, params):
        h = x
        n = len(params)
        for idx, (w, b) in enumerate(params):
            h = jnp.dot(h.astype(jnp.bfloat16), w.astype(jnp.bfloat16),
                        preferred_element_type=jnp.float32) + b
            if idx < n - 1:
                h = jnp.maximum(h, 0.0)
        return jax.nn.softmax(h, axis=1)

    expected = ref(x, params)
    assert out.shape == (batch, output_size)
    # Tolerance loosened for bf16 streaming + approx reciprocal.
    assert jnp.allclose(out, expected, atol=1e-2, rtol=1e-2), "mismatch vs reference"
    # rows of softmax output must sum to ~1 (approx reciprocal)
    assert jnp.allclose(jnp.sum(out, axis=1), 1.0, atol=1e-2)

    print("KERNEL_OK")
</pallas_src>

<mosaic_0001>
module attributes {stable_mosaic.version = 11 : i64} {
  func.func @ffn_kernel(%arg0: i32, %arg1: memref<8x32xbf16, #tpu.memory_space<vmem>>, %arg2: memref<32x128xbf16, #tpu.memory_space<vmem>>, %arg3: memref<1x128xf32, #tpu.memory_space<vmem>>, %arg4: memref<128x128xbf16, #tpu.memory_space<vmem>>, %arg5: memref<1x128xf32, #tpu.memory_space<vmem>>, %arg6: memref<128x128xbf16, #tpu.memory_space<vmem>>, %arg7: memref<1x128xf32, #tpu.memory_space<vmem>>, %arg8: memref<128x128xbf16, #tpu.memory_space<vmem>>, %arg9: memref<1x128xf32, #tpu.memory_space<vmem>>, %arg10: memref<8x4xf32, #tpu.memory_space<vmem>>) attributes {dimension_semantics = [#tpu.dimension_semantics<parallel>], iteration_bounds = array<i64: 1>, scalar_prefetch = 0 : i64, scratch_operands = 0 : i64, tpu.core_type = #tpu.core_type<tc>, window_params = [{transform_indices = @transform_0, window_bounds = array<i64: 8, 32>}, {pipeline_mode = #tpu.pipeline_mode<synchronous>, transform_indices = @transform_1, window_bounds = array<i64: 32, 128>}, {pipeline_mode = #tpu.pipeline_mode<synchronous>, transform_indices = @transform_2, window_bounds = array<i64: 1, 128>}, {pipeline_mode = #tpu.pipeline_mode<synchronous>, transform_indices = @transform_3, window_bounds = array<i64: 128, 128>}, {pipeline_mode = #tpu.pipeline_mode<synchronous>, transform_indices = @transform_4, window_bounds = array<i64: 1, 128>}, {pipeline_mode = #tpu.pipeline_mode<synchronous>, transform_indices = @transform_5, window_bounds = array<i64: 128, 128>}, {pipeline_mode = #tpu.pipeline_mode<synchronous>, transform_indices = @transform_6, window_bounds = array<i64: 1, 128>}, {pipeline_mode = #tpu.pipeline_mode<synchronous>, transform_indices = @transform_7, window_bounds = array<i64: 128, 128>}, {pipeline_mode = #tpu.pipeline_mode<synchronous>, transform_indices = @transform_8, window_bounds = array<i64: 1, 128>}, {transform_indices = @transform_9, window_bounds = array<i64: 8, 4>}]} {
    %c0 = arith.constant 0 : index
    %c0_0 = arith.constant 0 : index
    %0 = vector.load %arg1[%c0, %c0_0] : memref<8x32xbf16, #tpu.memory_space<vmem>>, vector<8x32xbf16>
    %c0_1 = arith.constant 0 : index
    %c0_2 = arith.constant 0 : index
    %1 = vector.load %arg2[%c0_1, %c0_2] : memref<32x128xbf16, #tpu.memory_space<vmem>>, vector<32x128xbf16>
    %cst = arith.constant dense<0.000000e+00> : vector<8x128xf32>
    %2 = tpu.matmul %0, %1, %cst {dimension_numbers = #tpu.dot_dimension_numbers<[1], [0], [0], [1], [0, 0, 1, 1], [], []>} : vector<8x32xbf16>, vector<32x128xbf16>, vector<8x128xf32> -> vector<8x128xf32>
    %c0_3 = arith.constant 0 : index
    %c0_4 = arith.constant 0 : index
    %3 = vector.load %arg3[%c0_3, %c0_4] : memref<1x128xf32, #tpu.memory_space<vmem>>, vector<1x128xf32>
    %4 = vector.broadcast %3 : vector<1x128xf32> to vector<8x128xf32>
    %5 = arith.addf %2, %4 : vector<8x128xf32>
    %cst_5 = arith.constant 0.000000e+00 : f32
    %6 = vector.broadcast %cst_5 : f32 to vector<8x128xf32>
    %7 = arith.maximumf %5, %6 : vector<8x128xf32>
    %8 = arith.truncf %7 : vector<8x128xf32> to vector<8x128xbf16>
    %c0_6 = arith.constant 0 : index
    %c0_7 = arith.constant 0 : index
    %9 = vector.load %arg4[%c0_6, %c0_7] : memref<128x128xbf16, #tpu.memory_space<vmem>>, vector<128x128xbf16>
    %cst_8 = arith.constant dense<0.000000e+00> : vector<8x128xf32>
    %10 = tpu.matmul %8, %9, %cst_8 {dimension_numbers = #tpu.dot_dimension_numbers<[1], [0], [0], [1], [0, 0, 1, 1], [], []>} : vector<8x128xbf16>, vector<128x128xbf16>, vector<8x128xf32> -> vector<8x128xf32>
    %c0_9 = arith.constant 0 : index
    %c0_10 = arith.constant 0 : index
    %11 = vector.load %arg5[%c0_9, %c0_10] : memref<1x128xf32, #tpu.memory_space<vmem>>, vector<1x128xf32>
    %12 = vector.broadcast %11 : vector<1x128xf32> to vector<8x128xf32>
    %13 = arith.addf %10, %12 : vector<8x128xf32>
    %cst_11 = arith.constant 0.000000e+00 : f32
    %14 = vector.broadcast %cst_11 : f32 to vector<8x128xf32>
    %15 = arith.maximumf %13, %14 : vector<8x128xf32>
    %16 = arith.truncf %15 : vector<8x128xf32> to vector<8x128xbf16>
    %c0_12 = arith.constant 0 : index
    %c0_13 = arith.constant 0 : index
    %17 = vector.load %arg6[%c0_12, %c0_13] : memref<128x128xbf16, #tpu.memory_space<vmem>>, vector<128x128xbf16>
    %cst_14 = arith.constant dense<0.000000e+00> : vector<8x128xf32>
    %18 = tpu.matmul %16, %17, %cst_14 {dimension_numbers = #tpu.dot_dimension_numbers<[1], [0], [0], [1], [0, 0, 1, 1], [], []>} : vector<8x128xbf16>, vector<128x128xbf16>, vector<8x128xf32> -> vector<8x128xf32>
    %c0_15 = arith.constant 0 : index
    %c0_16 = arith.constant 0 : index
    %19 = vector.load %arg7[%c0_15, %c0_16] : memref<1x128xf32, #tpu.memory_space<vmem>>, vector<1x128xf32>
    %20 = vector.broadcast %19 : vector<1x128xf32> to vector<8x128xf32>
    %21 = arith.addf %18, %20 : vector<8x128xf32>
    %cst_17 = arith.constant 0.000000e+00 : f32
    %22 = vector.broadcast %cst_17 : f32 to vector<8x128xf32>
    %23 = arith.maximumf %21, %22 : vector<8x128xf32>
    %24 = arith.truncf %23 : vector<8x128xf32> to vector<8x128xbf16>
    %c0_18 = arith.constant 0 : index
    %c0_19 = arith.constant 0 : index
    %25 = vector.load %arg8[%c0_18, %c0_19] : memref<128x128xbf16, #tpu.memory_space<vmem>>, vector<128x128xbf16>
    %cst_20 = arith.constant dense<0.000000e+00> : vector<8x128xf32>
    %26 = tpu.matmul %24, %25, %cst_20 {dimension_numbers = #tpu.dot_dimension_numbers<[1], [0], [0], [1], [0, 0, 1, 1], [], []>} : vector<8x128xbf16>, vector<128x128xbf16>, vector<8x128xf32> -> vector<8x128xf32>
    %c0_21 = arith.constant 0 : index
    %c0_22 = arith.constant 0 : index
    %27 = vector.load %arg9[%c0_21, %c0_22] : memref<1x128xf32, #tpu.memory_space<vmem>>, vector<1x128xf32>
    %28 = vector.broadcast %27 : vector<1x128xf32> to vector<8x128xf32>
    %29 = arith.addf %26, %28 : vector<8x128xf32>
    %cst_23 = arith.constant dense<0xFF800000> : vector<8xf32>
    %30 = vector.multi_reduction <maximumf>, %29, %cst_23 [1] : vector<8x128xf32> to vector<8xf32>
    %31 = vector.shape_cast %30 : vector<8xf32> to vector<8x1xf32>
    %32 = vector.broadcast %31 : vector<8x1xf32> to vector<8x128xf32>
    %33 = arith.subf %29, %32 : vector<8x128xf32>
    %34 = math.exp %33 : vector<8x128xf32>
    %cst_24 = arith.constant dense<0.000000e+00> : vector<8xf32>
    %35 = vector.multi_reduction <add>, %34, %cst_24 [1] : vector<8x128xf32> to vector<8xf32>
    %36 = vector.shape_cast %35 : vector<8xf32> to vector<8x1xf32>
    %37 = tpu.reciprocal %36 {approx = true} : vector<8x1xf32> -> vector<8x1xf32>
    %38 = vector.broadcast %37 : vector<8x1xf32> to vector<8x128xf32>
    %39 = arith.mulf %34, %38 : vector<8x128xf32>
    %40 = vector.extract_strided_slice %39 {offsets = [0, 0], sizes = [8, 4], strides = [1, 1]} : vector<8x128xf32> to vector<8x4xf32>
    %c0_25 = arith.constant 0 : index
    %c0_26 = arith.constant 0 : index
    %41 = vector.load %arg10[%c0_25, %c0_26] : memref<8x4xf32, #tpu.memory_space<vmem>>, vector<8x4xf32>
    tpu.vector_store %arg10[%c0_25, %c0_26], %40 {strides = array<i32>} : memref<8x4xf32, #tpu.memory_space<vmem>>, vector<8x4xf32>,
    return
  }
  func.func @transform_0(%arg0: i32) -> (i32, i32) {
    %c0_i32 = arith.constant 0 : i32
    %c0_i32_0 = arith.constant 0 : i32
    return %arg0, %c0_i32 : i32, i32
  }
  func.func @transform_1(%arg0: i32) -> (i32, i32) {
    %c0_i32 = arith.constant 0 : i32
    %c0_i32_0 = arith.constant 0 : i32
    %c0_i32_1 = arith.constant 0 : i32
    return %c0_i32, %c0_i32_0 : i32, i32
  }
  func.func @transform_2(%arg0: i32) -> (i32, i32) {
    %c0_i32 = arith.constant 0 : i32
    %c0_i32_0 = arith.constant 0 : i32
    %c0_i32_1 = arith.constant 0 : i32
    return %c0_i32, %c0_i32_0 : i32, i32
  }
  func.func @transform_3(%arg0: i32) -> (i32, i32) {
    %c0_i32 = arith.constant 0 : i32
    %c0_i32_0 = arith.constant 0 : i32
    %c0_i32_1 = arith.constant 0 : i32
    return %c0_i32, %c0_i32_0 : i32, i32
  }
  func.func @transform_4(%arg0: i32) -> (i32, i32) {
    %c0_i32 = arith.constant 0 : i32
    %c0_i32_0 = arith.constant 0 : i32
    %c0_i32_1 = arith.constant 0 : i32
    return %c0_i32, %c0_i32_0 : i32, i32
  }
  func.func @transform_5(%arg0: i32) -> (i32, i32) {
    %c0_i32 = arith.constant 0 : i32
    %c0_i32_0 = arith.constant 0 : i32
    %c0_i32_1 = arith.constant 0 : i32
    return %c0_i32, %c0_i32_0 : i32, i32
  }
  func.func @transform_6(%arg0: i32) -> (i32, i32) {
    %c0_i32 = arith.constant 0 : i32
    %c0_i32_0 = arith.constant 0 : i32
    %c0_i32_1 = arith.constant 0 : i32
    return %c0_i32, %c0_i32_0 : i32, i32
  }
  func.func @transform_7(%arg0: i32) -> (i32, i32) {
    %c0_i32 = arith.constant 0 : i32
    %c0_i32_0 = arith.constant 0 : i32
    %c0_i32_1 = arith.constant 0 : i32
    return %c0_i32, %c0_i32_0 : i32, i32
  }
  func.func @transform_8(%arg0: i32) -> (i32, i32) {
    %c0_i32 = arith.constant 0 : i32
    %c0_i32_0 = arith.constant 0 : i32
    %c0_i32_1 = arith.constant 0 : i32
    return %c0_i32, %c0_i32_0 : i32, i32
  }
  func.func @transform_9(%arg0: i32) -> (i32, i32) {
    %c0_i32 = arith.constant 0 : i32
    %c0_i32_0 = arith.constant 0 : i32
    return %arg0, %c0_i32 : i32, i32
  }
}

</mosaic_0001>

<llo_original>
// kernel: tpu_custom_call.1
$region0: #{tpu_custom_call.1}
  #allocation0 [shape = 'u32[]', space=smem, size = 0x4, offset = 0x4, fixed_abs, tag = 'smem constant byte address 0x4 - core index']
  #allocation1 [shape = 'u32[144,128]{1,0:T(1,128)}', space=vmem, size = 0x12000, scoped, tag = 'internal scratch']
  %s0 = inlined_call_operand.hbm [shape: bf16[8,32], index: 0, kind: input, shape index: {}]
  %s1 = inlined_call_operand.hbm [shape: bf16[32,128], index: 1, kind: input, shape index: {}]
  %s2 = inlined_call_operand.vmem [shape: f32[1,128], index: 2, kind: input, shape index: {}]
  %s3 = inlined_call_operand.hbm [shape: bf16[128,128], index: 3, kind: input, shape index: {}]
  %s4 = inlined_call_operand.vmem [shape: f32[1,128], index: 4, kind: input, shape index: {}]
  %s5 = inlined_call_operand.hbm [shape: bf16[128,128], index: 5, kind: input, shape index: {}]
  %s6 = inlined_call_operand.vmem [shape: f32[1,128], index: 6, kind: input, shape index: {}]
  %s7 = inlined_call_operand.hbm [shape: bf16[128,128], index: 7, kind: input, shape index: {}]
  %s8 = inlined_call_operand.vmem [shape: f32[1,128], index: 8, kind: input, shape index: {}]
  %s9 = inlined_call_operand.vmem [shape: f32[8,4], index: 9, kind: output, shape index: {}]
  %s10 = sld [smem:[#allocation0]]
  $region66: #{tpu_custom_call.1} parent=0
    _
  %s12 = ssub.s32 1, %s10
  %s13 = scalar_select 0, %s12, %s10
  $region1: #{tpu_custom_call.1} parent=0
    #allocation2 [shape = 'u8[2048]{0}', space=vmem, size = 0x800, scoped, tag = 'input window, operand 0, single buffered']
    #allocation3 [shape = 's32[1]{0}', space=sflag, size = 0x4, scoped, tag = 'scoped memory for tpu_custom_call.1']
    #allocation4 [shape = 'u8[8192]{0}', space=vmem, size = 0x2000, scoped, tag = 'input window, operand 1, single buffered']
    #allocation5 [shape = 's32[1]{0}', space=sflag, size = 0x4, scoped, tag = 'scoped memory for tpu_custom_call.1']
    #allocation6 [shape = 'u8[32768]{0}', space=vmem, size = 0x8000, scoped, tag = 'input window, operand 3, single buffered']
    #allocation7 [shape = 'u8[32768]{0}', space=vmem, size = 0x8000, scoped, tag = 'input window, operand 5, single buffered']
    #allocation8 [shape = 's32[1]{0}', space=sflag, size = 0x4, scoped, tag = 'scoped memory for tpu_custom_call.1']
    #allocation9 [shape = 'u8[32768]{0}', space=vmem, size = 0x8000, scoped, tag = 'input window, operand 7, single buffered']
    %14 = vsyncpa [#allocation3], 0
    %15 = vsyncpa [#allocation5], 0
    %16 = vsyncpa [#allocation8], 0
    // Predicated region
    $region2: #{tpu_custom_call.1} parent=1 // pred_check
      _
    $region3: #{tpu_custom_call.1} parent=1 // pred_check_branch
      %18 = sbr.rel (0) target = $region5
    $region4: #{tpu_custom_call.1} parent=1 // pred_region
      %s20 = ssub.s32 64, 64
      %21 = vsyncadd [#allocation3], %s20
      %s23 = sshll.u32 [#allocation2], 4
      %s24 = int_to_ptr.vmem [resolvable:$true] %s23
      %26 = dma.hbm_to_vmem [thread:$0]  %s0, 64, %s24, [#allocation3]
    $region5: #{tpu_custom_call.1} parent=1 // pred_fallthru
      _
    // Predicated region
    $region6: #{tpu_custom_call.1} parent=1 // pred_check
      _
    $region7: #{tpu_custom_call.1} parent=1 // pred_check_branch
      %28 = sbr.rel (0) target = $region9
    $region8: #{tpu_custom_call.1} parent=1 // pred_region
      %s30 = ssub.s32 256, 256
      %31 = vsyncadd [#allocation5], %s30
      %s32 = sshll.u32 [#allocation4], 4
      %s33 = int_to_ptr.vmem [resolvable:$true] %s32
      %38 = dma.hbm_to_vmem [thread:$0]  %s1, 256, %s33, [#allocation5], 64, 64, 4
    $region9: #{tpu_custom_call.1} parent=1 // pred_fallthru
      _
    // Predicated region
    $region10: #{tpu_custom_call.1} parent=1 // pred_check
      _
    $region11: #{tpu_custom_call.1} parent=1 // pred_check_branch
      %40 = sbr.rel (0) target = $region13
    $region12: #{tpu_custom_call.1} parent=1 // pred_region
      _
    $region13: #{tpu_custom_call.1} parent=1 // pred_fallthru
      _
    // Predicated region
    $region14: #{tpu_custom_call.1} parent=1 // pred_check
      _
    $region15: #{tpu_custom_call.1} parent=1 // pred_check_branch
      %42 = sbr.rel (0) target = $region17
    $region16: #{tpu_custom_call.1} parent=1 // pred_region
      %s44 = ssub.s32 1024, 1024
      %45 = vsyncadd [#allocation5], %s44
      %s46 = sshll.u32 [#allocation6], 4
      %s47 = int_to_ptr.vmem [resolvable:$true] %s46
      %52 = dma.hbm_to_vmem [thread:$0]  %s3, 1024, %s47, [#allocation5], 64, 64, 4
    $region17: #{tpu_custom_call.1} parent=1 // pred_fallthru
      _
    // Predicated region
    $region18: #{tpu_custom_call.1} parent=1 // pred_check
      _
    $region19: #{tpu_custom_call.1} parent=1 // pred_check_branch
      %54 = sbr.rel (0) target = $region21
    $region20: #{tpu_custom_call.1} parent=1 // pred_region
      _
    $region21: #{tpu_custom_call.1} parent=1 // pred_fallthru
      _
    // Predicated region
    $region22: #{tpu_custom_call.1} parent=1 // pred_check
      _
    $region23: #{tpu_custom_call.1} parent=1 // pred_check_branch
      %56 = sbr.rel (0) target = $region25
    $region24: #{tpu_custom_call.1} parent=1 // pred_region
      %s58 = ssub.s32 1024, 1024
      %59 = vsyncadd [#allocation8], %s58
      %s60 = sshll.u32 [#allocation7], 4
      %s61 = int_to_ptr.vmem [resolvable:$true] %s60
      %66 = dma.hbm_to_vmem [thread:$0]  %s5, 1024, %s61, [#allocation8], 64, 64, 4
    $region25: #{tpu_custom_call.1} parent=1 // pred_fallthru
      _
    // Predicated region
    $region26: #{tpu_custom_call.1} parent=1 // pred_check
      _
    $region27: #{tpu_custom_call.1} parent=1 // pred_check_branch
      %68 = sbr.rel (0) target = $region29
    $region28: #{tpu_custom_call.1} parent=1 // pred_region
      _
    $region29: #{tpu_custom_call.1} parent=1 // pred_fallthru
      _
    // Predicated region
    $region30: #{tpu_custom_call.1} parent=1 // pred_check
      _
    $region31: #{tpu_custom_call.1} parent=1 // pred_check_branch
      %70 = sbr.rel (0) target = $region33
    $region32: #{tpu_custom_call.1} parent=1 // pred_region
      %s72 = ssub.s32 1024, 1024
      %73 = vsyncadd [#allocation8], %s72
      %s74 = sshll.u32 [#allocation9], 4
      %s75 = int_to_ptr.vmem [resolvable:$true] %s74
      %80 = dma.hbm_to_vmem [thread:$0]  %s7, 1024, %s75, [#allocation8], 64, 64, 4
    $region33: #{tpu_custom_call.1} parent=1 // pred_fallthru
      _
    // Predicated region
    $region34: #{tpu_custom_call.1} parent=1 // pred_check
      _
    $region35: #{tpu_custom_call.1} parent=1 // pred_check_branch
      %82 = sbr.rel (0) target = $region37
    $region36: #{tpu_custom_call.1} parent=1 // pred_region
      _
    $region37: #{tpu_custom_call.1} parent=1 // pred_fallthru
      _
    // Predicated region
    $region38: #{tpu_custom_call.1} parent=1 // pred_check
      _
    $region39: #{tpu_custom_call.1} parent=1 // pred_check_branch
      %84 = sbr.rel (0) target = $region41
    $region40: #{tpu_custom_call.1} parent=1 // pred_region
      %85 = dma.done [#allocation3], 64
    $region41: #{tpu_custom_call.1} parent=1 // pred_fallthru
      _
    // Predicated region
    $region42: #{tpu_custom_call.1} parent=1 // pred_check
      _
    $region43: #{tpu_custom_call.1} parent=1 // pred_check_branch
      %87 = sbr.rel (0) target = $region45
    $region44: #{tpu_custom_call.1} parent=1 // pred_region
      %88 = dma.done [#allocation5], 256
    $region45: #{tpu_custom_call.1} parent=1 // pred_fallthru
      _
    // Predicated region
    $region46: #{tpu_custom_call.1} parent=1 // pred_check
      _
    $region47: #{tpu_custom_call.1} parent=1 // pred_check_branch
      %90 = sbr.rel (0) target = $region49
    $region48: #{tpu_custom_call.1} parent=1 // pred_region
      %91 = dma.done [#allocation5], 1024
    $region49: #{tpu_custom_call.1} parent=1 // pred_fallthru
      _
    // Predicated region
    $region50: #{tpu_custom_call.1} parent=1 // pred_check
      _
    $region51: #{tpu_custom_call.1} parent=1 // pred_check_branch
      %93 = sbr.rel (0) target = $region53
    $region52: #{tpu_custom_call.1} parent=1 // pred_region
      %94 = dma.done [#allocation8], 1024
    $region53: #{tpu_custom_call.1} parent=1 // pred_fallthru
      _
    // Predicated region
    $region54: #{tpu_custom_call.1} parent=1 // pred_check
      _
    $region55: #{tpu_custom_call.1} parent=1 // pred_check_branch
      %96 = sbr.rel (0) target = $region57
    $region56: #{tpu_custom_call.1} parent=1 // pred_region
      %97 = dma.done [#allocation8], 1024
    $region57: #{tpu_custom_call.1} parent=1 // pred_fallthru
      _
    %v99 = vld [vmem:[#allocation2] sm:$0xf]
    %v100 = vld [vmem:[#allocation4] sm:$0xf]
    %v101 = vld [vmem:[#allocation4 + $0x4] sm:$0xf]
    %v102 = vld [vmem:[#allocation4 + $0x8] sm:$0xf]
    %v103 = vld [vmem:[#allocation4 + $0xc] sm:$0xf]
    %v104 = vld [vmem:[%s2] sm:$0x1]
    %v106 = vlaneseq
    %v107 = vshrl.u32 %v106, 7
    %v108 = vsub.s32 0, %v107
    %v109 = vrot.slane %v104, %v108
    %v115 = vunpack.c.l.b16 %v100
    %v116 = vunpack.c.l.b16 %v101
    %v117 = vunpack.c.l.b16 %v102
    %v118 = vunpack.c.l.b16 %v103
    %v119 = vpack.c.b16 %v116, %v115
    %v120 = vpack.c.b16 %v118, %v117
    %vm123 = vcmask 261120
    %v125 = vsel %vm123, %v99, 0
    %127 = vmatprep.subr.bf16.mxu0 0
    %128 = vmatpush1.bf16.msra.mxu0 %v119
    %129 = vmatprep.subr.bf16.mxu0 0
    %130 = vmatpush1.bf16.msra.mxu0 %v120
    %131 = vmatprep.subr.bf16.mxu0 0
    %132 = vmatpush1.bf16.msra.mxu0 0
    %133 = vmatprep.subr.bf16.mxu0 0
    %134 = vmatpush1.bf16.msra.mxu0 0
    %135 = vmatprep.subr.bf16.mxu0 0
    %136 = vmatpush1.bf16.msra.mxu0 0
    %137 = vmatprep.subr.bf16.mxu0 0
    %138 = vmatpush1.bf16.msra.mxu0 0
    %139 = vmatprep.subr.bf16.mxu0 0
    %140 = vmatpush1.bf16.msra.mxu0 0
    %141 = vmatprep.subr.bf16.mxu0 0
    %142 = vmatpush1.bf16.msra.mxu0 0
    %143 = vmatprep.subr.bf16.mxu0 0
    %144 = vmatpush1.bf16.msra.mxu0 0
    %145 = vmatprep.subr.bf16.mxu0 0
    %146 = vmatpush1.bf16.msra.mxu0 0
    %147 = vmatprep.subr.bf16.mxu0 0
    %148 = vmatpush1.bf16.msra.mxu0 0
    %149 = vmatprep.subr.bf16.mxu0 0
    %150 = vmatpush1.bf16.msra.mxu0 0
    %151 = vmatprep.subr.bf16.mxu0 0
    %152 = vmatpush1.bf16.msra.mxu0 0
    %153 = vmatprep.subr.bf16.mxu0 0
    %154 = vmatpush1.bf16.msra.mxu0 0
    %155 = vmatprep.subr.bf16.mxu0 0
    %156 = vmatpush1.bf16.msra.mxu0 0
    %157 = vmatprep.subr.bf16.mxu0 0
    %158 = vmatpush1.bf16.msra.mxu0 0
    %159 = vmatprep.mubr.bf16.mxu0 0
    %160 = vmatmul.mubr.bf16.gmra.mrb[0].mxu0 %v125
    %v161 = vpop.f32.mrb[0].mxu0
    %v162 = vadd.f32 %v109, %v161
    %v163 = vpop.f32.mrb[0].mxu0
    %v164 = vpop.f32.mrb[0].mxu0
    %v165 = vpop.f32.mrb[0].mxu0
    %166 = vdwg.mxu0
    %v167 = vmax.f32 %v162, 0.0
    %v168 = vpack.c.bf16 %v167, %v167
    %v169 = vld [vmem:[#allocation6] sm:$0xf]
    %v170 = vld [vmem:[#allocation6 + $0x4] sm:$0xf]
    %v171 = vld [vmem:[#allocation6 + $0x8] sm:$0xf]
    %v172 = vld [vmem:[#allocation6 + $0xc] sm:$0xf]
    %v173 = vld [vmem:[#allocation6 + $0x10] sm:$0xf]
    %v174 = vld [vmem:[#allocation6 + $0x14] sm:$0xf]
    %v175 = vld [vmem:[#allocation6 + $0x18] sm:$0xf]
    %v176 = vld [vmem:[#allocation6 + $0x1c] sm:$0xf]
    %v177 = vld [vmem:[#allocation6 + $0x20] sm:$0xf]
    %v178 = vld [vmem:[#allocation6 + $0x24] sm:$0xf]
    %v179 = vld [vmem:[#allocation6 + $0x28] sm:$0xf]
    %v180 = vld [vmem:[#allocation6 + $0x2c] sm:$0xf]
    %v181 = vld [vmem:[#allocation6 + $0x30] sm:$0xf]
    %v182 = vld [vmem:[#allocation6 + $0x34] sm:$0xf]
    %v183 = vld [vmem:[#allocation6 + $0x38] sm:$0xf]
    %v184 = vld [vmem:[#allocation6 + $0x3c] sm:$0xf]
    %v185 = vld [vmem:[%s4] sm:$0x1]
    %v187 = vlaneseq
    %v188 = vshrl.u32 %v187, 7
    %v189 = vsub.s32 0, %v188
    %v190 = vrot.slane %v185, %v189
    %v208 = vunpack.c.l.b16 %v169
    %v209 = vunpack.c.l.b16 %v170
    %v210 = vunpack.c.l.b16 %v171
    %v211 = vunpack.c.l.b16 %v172
    %v212 = vunpack.c.l.b16 %v173
    %v213 = vunpack.c.l.b16 %v174
    %v214 = vunpack.c.l.b16 %v175
    %v215 = vunpack.c.l.b16 %v176
    %v216 = vunpack.c.l.b16 %v177
    %v217 = vunpack.c.l.b16 %v178
    %v218 = vunpack.c.l.b16 %v179
    %v219 = vunpack.c.l.b16 %v180
    %v220 = vunpack.c.l.b16 %v181
    %v221 = vunpack.c.l.b16 %v182
    %v222 = vunpack.c.l.b16 %v183
    %v223 = vunpack.c.l.b16 %v184
    %v224 = vpack.c.b16 %v209, %v208
    %v225 = vpack.c.b16 %v211, %v210
    %v226 = vpack.c.b16 %v213, %v212
    %v227 = vpack.c.b16 %v215, %v214
    %v228 = vpack.c.b16 %v217, %v216
    %v229 = vpack.c.b16 %v219, %v218
    %v230 = vpack.c.b16 %v221, %v220
    %v231 = vpack.c.b16 %v223, %v222
    %240 = vmatprep.subr.bf16.mxu0 0
    %241 = vmatpush1.bf16.msra.mxu0 %v224
    %242 = vmatprep.subr.bf16.mxu0 0
    %243 = vmatpush1.bf16.msra.mxu0 %v225
    %244 = vmatprep.subr.bf16.mxu0 0
    %245 = vmatpush1.bf16.msra.mxu0 %v226
    %246 = vmatprep.subr.bf16.mxu0 0
    %247 = vmatpush1.bf16.msra.mxu0 %v227
    %248 = vmatprep.subr.bf16.mxu0 0
    %249 = vmatpush1.bf16.msra.mxu0 %v228
    %250 = vmatprep.subr.bf16.mxu0 0
    %251 = vmatpush1.bf16.msra.mxu0 %v229
    %252 = vmatprep.subr.bf16.mxu0 0
    %253 = vmatpush1.bf16.msra.mxu0 %v230
    %254 = vmatprep.subr.bf16.mxu0 0
    %255 = vmatpush1.bf16.msra.mxu0 %v231
    %256 = vmatprep.subr.bf16.mxu0 0
    %257 = vmatpush1.bf16.msra.mxu0 0
    %258 = vmatprep.subr.bf16.mxu0 0
    %259 = vmatpush1.bf16.msra.mxu0 0
    %260 = vmatprep.subr.bf16.mxu0 0
    %261 = vmatpush1.bf16.msra.mxu0 0
    %262 = vmatprep.subr.bf16.mxu0 0
    %263 = vmatpush1.bf16.msra.mxu0 0
    %264 = vmatprep.subr.bf16.mxu0 0
    %265 = vmatpush1.bf16.msra.mxu0 0
    %266 = vmatprep.subr.bf16.mxu0 0
    %267 = vmatpush1.bf16.msra.mxu0 0
    %268 = vmatprep.subr.bf16.mxu0 0
    %269 = vmatpush1.bf16.msra.mxu0 0
    %270 = vmatprep.subr.bf16.mxu0 0
    %271 = vmatpush1.bf16.msra.mxu0 0
    %272 = vmatprep.mubr.bf16.mxu0 0
    %273 = vmatmul.mubr.bf16.gmra.mrb[0].mxu0 %v168
    %v274 = vpop.f32.mrb[0].mxu0
    %v275 = vadd.f32 %v190, %v274
    %v276 = vpop.f32.mrb[0].mxu0
    %v277 = vpop.f32.mrb[0].mxu0
    %v278 = vpop.f32.mrb[0].mxu0
    %279 = vdwg.mxu0
    %v280 = vmax.f32 %v275, 0.0
    %v281 = vpack.c.bf16 %v280, %v280
    %v282 = vld [vmem:[#allocation7] sm:$0xf]
    %v283 = vld [vmem:[#allocation7 + $0x4] sm:$0xf]
    %v284 = vld [vmem:[#allocation7 + $0x8] sm:$0xf]
    %v285 = vld [vmem:[#allocation7 + $0xc] sm:$0xf]
    %v286 = vld [vmem:[#allocation7 + $0x10] sm:$0xf]
    %v287 = vld [vmem:[#allocation7 + $0x14] sm:$0xf]
    %v288 = vld [vmem:[#allocation7 + $0x18] sm:$0xf]
    %v289 = vld [vmem:[#allocation7 + $0x1c] sm:$0xf]
    %v290 = vld [vmem:[#allocation7 + $0x20] sm:$0xf]
    %v291 = vld [vmem:[#allocation7 + $0x24] sm:$0xf]
    %v292 = vld [vmem:[#allocation7 + $0x28] sm:$0xf]
    %v293 = vld [vmem:[#allocation7 + $0x2c] sm:$0xf]
    %v294 = vld [vmem:[#allocation7 + $0x30] sm:$0xf]
    %v295 = vld [vmem:[#allocation7 + $0x34] sm:$0xf]
    %v296 = vld [vmem:[#allocation7 + $0x38] sm:$0xf]
    %v297 = vld [vmem:[#allocation7 + $0x3c] sm:$0xf]
    %v298 = vld [vmem:[%s6] sm:$0x1]
    %v300 = vlaneseq
    %v301 = vshrl.u32 %v300, 7
    %v302 = vsub.s32 0, %v301
    %v303 = vrot.slane %v298, %v302
    %v321 = vunpack.c.l.b16 %v282
    %v322 = vunpack.c.l.b16 %v283
    %v323 = vunpack.c.l.b16 %v284
    %v324 = vunpack.c.l.b16 %v285
    %v325 = vunpack.c.l.b16 %v286
    %v326 = vunpack.c.l.b16 %v287
    %v327 = vunpack.c.l.b16 %v288
    %v328 = vunpack.c.l.b16 %v289
    %v329 = vunpack.c.l.b16 %v290
    %v330 = vunpack.c.l.b16 %v291
    %v331 = vunpack.c.l.b16 %v292
    %v332 = vunpack.c.l.b16 %v293
    %v333 = vunpack.c.l.b16 %v294
    %v334 = vunpack.c.l.b16 %v295
    %v335 = vunpack.c.l.b16 %v296
    %v336 = vunpack.c.l.b16 %v297
    %v337 = vpack.c.b16 %v322, %v321
    %v338 = vpack.c.b16 %v324, %v323
    %v339 = vpack.c.b16 %v326, %v325
    %v340 = vpack.c.b16 %v328, %v327
    %v341 = vpack.c.b16 %v330, %v329
    %v342 = vpack.c.b16 %v332, %v331
    %v343 = vpack.c.b16 %v334, %v333
    %v344 = vpack.c.b16 %v336, %v335
    %353 = vmatprep.subr.bf16.mxu0 0
    %354 = vmatpush1.bf16.msra.mxu0 %v337
    %355 = vmatprep.subr.bf16.mxu0 0
    %356 = vmatpush1.bf16.msra.mxu0 %v338
    %357 = vmatprep.subr.bf16.mxu0 0
    %358 = vmatpush1.bf16.msra.mxu0 %v339
    %359 = vmatprep.subr.bf16.mxu0 0
    %360 = vmatpush1.bf16.msra.mxu0 %v340
    %361 = vmatprep.subr.bf16.mxu0 0
    %362 = vmatpush1.bf16.msra.mxu0 %v341
    %363 = vmatprep.subr.bf16.mxu0 0
    %364 = vmatpush1.bf16.msra.mxu0 %v342
    %365 = vmatprep.subr.bf16.mxu0 0
    %366 = vmatpush1.bf16.msra.mxu0 %v343
    %367 = vmatprep.subr.bf16.mxu0 0
    %368 = vmatpush1.bf16.msra.mxu0 %v344
    %369 = vmatprep.subr.bf16.mxu0 0
    %370 = vmatpush1.bf16.msra.mxu0 0
    %371 = vmatprep.subr.bf16.mxu0 0
    %372 = vmatpush1.bf16.msra.mxu0 0
    %373 = vmatprep.subr.bf16.mxu0 0
    %374 = vmatpush1.bf16.msra.mxu0 0
    %375 = vmatprep.subr.bf16.mxu0 0
    %376 = vmatpush1.bf16.msra.mxu0 0
    %377 = vmatprep.subr.bf16.mxu0 0
    %378 = vmatpush1.bf16.msra.mxu0 0
    %379 = vmatprep.subr.bf16.mxu0 0
    %380 = vmatpush1.bf16.msra.mxu0 0
    %381 = vmatprep.subr.bf16.mxu0 0
    %382 = vmatpush1.bf16.msra.mxu0 0
    %383 = vmatprep.subr.bf16.mxu0 0
    %384 = vmatpush1.bf16.msra.mxu0 0
    %385 = vmatprep.mubr.bf16.mxu0 0
    %386 = vmatmul.mubr.bf16.gmra.mrb[0].mxu0 %v281
    %v387 = vpop.f32.mrb[0].mxu0
    %v388 = vadd.f32 %v303, %v387
    %v389 = vpop.f32.mrb[0].mxu0
    %v390 = vpop.f32.mrb[0].mxu0
    %v391 = vpop.f32.mrb[0].mxu0
    %392 = vdwg.mxu0
    %v393 = vmax.f32 %v388, 0.0
    %v394 = vpack.c.bf16 %v393, %v393
    %v395 = vld [vmem:[#allocation9] sm:$0xf]
    %v396 = vld [vmem:[#allocation9 + $0x4] sm:$0xf]
    %v397 = vld [vmem:[#allocation9 + $0x8] sm:$0xf]
    %v398 = vld [vmem:[#allocation9 + $0xc] sm:$0xf]
    %v399 = vld [vmem:[#allocation9 + $0x10] sm:$0xf]
    %v400 = vld [vmem:[#allocation9 + $0x14] sm:$0xf]
    %v401 = vld [vmem:[#allocation9 + $0x18] sm:$0xf]
    %v402 = vld [vmem:[#allocation9 + $0x1c] sm:$0xf]
    %v403 = vld [vmem:[#allocation9 + $0x20] sm:$0xf]
    %v404 = vld [vmem:[#allocation9 + $0x24] sm:$0xf]
    %v405 = vld [vmem:[#allocation9 + $0x28] sm:$0xf]
    %v406 = vld [vmem:[#allocation9 + $0x2c] sm:$0xf]
    %v407 = vld [vmem:[#allocation9 + $0x30] sm:$0xf]
    %v408 = vld [vmem:[#allocation9 + $0x34] sm:$0xf]
    %v409 = vld [vmem:[#allocation9 + $0x38] sm:$0xf]
    %v410 = vld [vmem:[#allocation9 + $0x3c] sm:$0xf]
    %v411 = vld [vmem:[%s8] sm:$0x1]
    %v413 = vlaneseq
    %v414 = vshrl.u32 %v413, 7
    %v415 = vsub.s32 0, %v414
    %v416 = vrot.slane %v411, %v415
    %v434 = vunpack.c.l.b16 %v395
    %v435 = vunpack.c.l.b16 %v396
    %v436 = vunpack.c.l.b16 %v397
    %v437 = vunpack.c.l.b16 %v398
    %v438 = vunpack.c.l.b16 %v399
    %v439 = vunpack.c.l.b16 %v400
    %v440 = vunpack.c.l.b16 %v401
    %v441 = vunpack.c.l.b16 %v402
    %v442 = vunpack.c.l.b16 %v403
    %v443 = vunpack.c.l.b16 %v404
    %v444 = vunpack.c.l.b16 %v405
    %v445 = vunpack.c.l.b16 %v406
    %v446 = vunpack.c.l.b16 %v407
    %v447 = vunpack.c.l.b16 %v408
    %v448 = vunpack.c.l.b16 %v409
    %v449 = vunpack.c.l.b16 %v410
    %v450 = vpack.c.b16 %v435, %v434
    %v451 = vpack.c.b16 %v437, %v436
    %v452 = vpack.c.b16 %v439, %v438
    %v453 = vpack.c.b16 %v441, %v440
    %v454 = vpack.c.b16 %v443, %v442
    %v455 = vpack.c.b16 %v445, %v444
    %v456 = vpack.c.b16 %v447, %v446
    %v457 = vpack.c.b16 %v449, %v448
    %466 = vmatprep.subr.bf16.mxu0 0
    %467 = vmatpush1.bf16.msra.mxu0 %v450
    %468 = vmatprep.subr.bf16.mxu0 0
    %469 = vmatpush1.bf16.msra.mxu0 %v451
    %470 = vmatprep.subr.bf16.mxu0 0
    %471 = vmatpush1.bf16.msra.mxu0 %v452
    %472 = vmatprep.subr.bf16.mxu0 0
    %473 = vmatpush1.bf16.msra.mxu0 %v453
    %474 = vmatprep.subr.bf16.mxu0 0
    %475 = vmatpush1.bf16.msra.mxu0 %v454
    %476 = vmatprep.subr.bf16.mxu0 0
    %477 = vmatpush1.bf16.msra.mxu0 %v455
    %478 = vmatprep.subr.bf16.mxu0 0
    %479 = vmatpush1.bf16.msra.mxu0 %v456
    %480 = vmatprep.subr.bf16.mxu0 0
    %481 = vmatpush1.bf16.msra.mxu0 %v457
    %482 = vmatprep.subr.bf16.mxu0 0
    %483 = vmatpush1.bf16.msra.mxu0 0
    %484 = vmatprep.subr.bf16.mxu0 0
    %485 = vmatpush1.bf16.msra.mxu0 0
    %486 = vmatprep.subr.bf16.mxu0 0
    %487 = vmatpush1.bf16.msra.mxu0 0
    %488 = vmatprep.subr.bf16.mxu0 0
    %489 = vmatpush1.bf16.msra.mxu0 0
    %490 = vmatprep.subr.bf16.mxu0 0
    %491 = vmatpush1.bf16.msra.mxu0 0
    %492 = vmatprep.subr.bf16.mxu0 0
    %493 = vmatpush1.bf16.msra.mxu0 0
    %494 = vmatprep.subr.bf16.mxu0 0
    %495 = vmatpush1.bf16.msra.mxu0 0
    %496 = vmatprep.subr.bf16.mxu0 0
    %497 = vmatpush1.bf16.msra.mxu0 0
    %498 = vmatprep.mubr.bf16.mxu0 0
    %499 = vmatmul.mubr.bf16.gmra.mrb[0].mxu0 %v394
    %v500 = vpop.f32.mrb[0].mxu0
    %v501 = vadd.f32 %v416, %v500
    %v502 = vpop.f32.mrb[0].mxu0
    %v503 = vpop.f32.mrb[0].mxu0
    %v504 = vpop.f32.mrb[0].mxu0
    %505 = vdwg.mxu0
    %506 = vmax.xlane.f32.xlu0 %v501
    %v507 = vpop.xlane.xlu0 %506
    %v508 = vsub.f32 %v501, %v507
    %v509 = vmul.f32 %v508, 1.442695
    %v510 = vpow.pop %v509
    %511 = vadd.xlane.f32.xlu0 %v510
    %v512 = vpop.xlane.xlu0 %511
    %v513 = vrcp.pop %v512
    %v514 = vmul.f32 %v510, %v513
    %vm515 = vcmask 31744
    %516 = vst.msk [vmem:[%s9] sm:$0xff] %vm515, %v514
    // Predicated region
    $region58: #{tpu_custom_call.1} parent=1 // pred_check
      _
    $region59: #{tpu_custom_call.1} parent=1 // pred_check_branch
      %518 = sbr.rel (0) target = $region61
    $region60: #{tpu_custom_call.1} parent=1 // pred_region
      _
    $region61: #{tpu_custom_call.1} parent=1 // pred_fallthru
      _
    // Predicated region
    $region62: #{tpu_custom_call.1} parent=1 // pred_check
      _
    $region63: #{tpu_custom_call.1} parent=1 // pred_check_branch
      %520 = sbr.rel (0) target = $region65
    $region64: #{tpu_custom_call.1} parent=1 // pred_region
      _
    $region65: #{tpu_custom_call.1} parent=1 // pred_fallthru
      _
    %521 = vsyncpa [#allocation3], 1
    %522 = vsyncpa [#allocation5], 1
    %523 = vsyncpa [#allocation8], 1

</llo_original>
